<compile_context>
chip_gen: v7x
topology: tpu7x:2x2x1
jax: 0.10.0
libtpu: 0.0.40
codegen_flags: <defaults>
</compile_context>

<pallas_src>
import functools

import jax
import jax.numpy as jnp
from jax.experimental import pallas as pl
from jax.experimental.pallas import tpu as pltpu


def _round_up(v, m):
    return (v + m - 1) // m * m


def _pick_tile(dim, candidates):
    for c in candidates:
        if dim >= c and dim % c == 0:
            return c
    return dim  # full extent is always a legal block dim


_VMEM_BUDGET = 40 << 20          # keep well under v7x's 64 MiB physical VMEM
_VMEM_CAP = 48 << 20


def _vmem_limit(need_bytes):
    return int(min(max(need_bytes + (4 << 20), 24 << 20), _VMEM_CAP))


# ----------------------------------------------------------------------------
# Tiled GEMM + bias (+ optional fused ReLU):  y = act(x @ W + b)
# ----------------------------------------------------------------------------
def _matmul_bias_kernel(x_ref, w_ref, b_ref, o_ref, acc_ref, *, apply_relu):
    @pl.when(pl.program_id(2) == 0)
    def _init():
        acc_ref[...] = jnp.zeros_like(acc_ref)

    acc_ref[...] += jnp.dot(x_ref[...], w_ref[...],
                            preferred_element_type=jnp.float32)

    @pl.when(pl.program_id(2) == pl.num_programs(2) - 1)
    def _finalize():
        out = acc_ref[...] + b_ref[...]
        if apply_relu:
            out = jnp.maximum(out, 0.0)
        o_ref[...] = out.astype(o_ref.dtype)


def matmul_bias(x, w, b2d, *, apply_relu=False, out_dtype=None):
    """y = act(x @ w + b);  b2d is (1, N) float32, x/w in the compute dtype."""
    M, K = x.shape
    K2, N = w.shape
    assert K == K2 and b2d.shape == (1, N)
    out_dtype = out_dtype or x.dtype
    isz = x.dtype.itemsize
    osz = jnp.dtype(out_dtype).itemsize

    tm = M if M <= 256 else _pick_tile(M, (256, 128, 64, 32, 16, 8))
    tn = N if N <= 128 else _pick_tile(N, (1024, 512, 256, 128))
    tk = K if K <= 128 else _pick_tile(K, (2048, 1024, 512, 256, 128))

    def footprint(tn_, tk_):
        return (2 * (tm * tk_ + tk_ * tn_) * isz + 2 * tn_ * 4
                + 2 * tm * tn_ * osz + tm * tn_ * 4)

    # Shrink K/N tiles until the double-buffered footprint fits the budget.
    while footprint(tn, tk) > _VMEM_BUDGET:
        if tk > 128 and K % (tk // 2) == 0 and tk >= tn:
            tk //= 2
        elif tn > 128 and N % (tn // 2) == 0:
            tn //= 2
        elif tk > 128 and K % (tk // 2) == 0:
            tk //= 2
        else:
            break

    grid = (M // tm, N // tn, K // tk)
    return pl.pallas_call(
        functools.partial(_matmul_bias_kernel, apply_relu=apply_relu),
        out_shape=jax.ShapeDtypeStruct((M, N), out_dtype),
        grid=grid,
        in_specs=[
            pl.BlockSpec((tm, tk), lambda i, j, k: (i, k)),
            pl.BlockSpec((tk, tn), lambda i, j, k: (k, j)),
            pl.BlockSpec((1, tn), lambda i, j, k: (0, j)),
        ],
        out_specs=pl.BlockSpec((tm, tn), lambda i, j, k: (i, j)),
        scratch_shapes=[pltpu.VMEM((tm, tn), jnp.float32)],
        compiler_params=pltpu.CompilerParams(
            dimension_semantics=("parallel", "parallel", "arbitrary"),
            vmem_limit_bytes=_vmem_limit(footprint(tn, tk)),
        ),
    )(x, w, b2d)


# ----------------------------------------------------------------------------
# Fused MLP:  y = (relu(x @ W1 + b1)) @ W2 + b2, intermediate stays in VMEM.
# ----------------------------------------------------------------------------
def _mlp_fused_kernel(x_ref, w1_ref, b1_ref, w2_ref, b2_ref, o_ref):
    h = jnp.dot(x_ref[...], w1_ref[...], preferred_element_type=jnp.float32)
    h = jnp.maximum(h + b1_ref[...], 0.0)
    y = jnp.dot(h.astype(w2_ref.dtype), w2_ref[...],
                preferred_element_type=jnp.float32)
    o_ref[...] = (y + b2_ref[...]).astype(o_ref.dtype)


def mlp_head(x, w1, b1_2d, w2, b2_2d, *, out_dtype=None):
    M, K1 = x.shape
    Hd = w1.shape[1]
    N = w2.shape[1]
    out_dtype = out_dtype or x.dtype
    isz = x.dtype.itemsize

    tm = M if M <= 256 else _pick_tile(M, (256, 128, 64, 32, 16, 8))
    need = (2 * tm * K1 * isz
            + 2 * K1 * Hd * w1.dtype.itemsize
            + 2 * Hd * N * w2.dtype.itemsize
            + 2 * tm * N * jnp.dtype(out_dtype).itemsize
            + 2 * (Hd + N) * 4
            + 2 * tm * Hd * 4)

    if need <= _VMEM_BUDGET:
        return pl.pallas_call(
            _mlp_fused_kernel,
            out_shape=jax.ShapeDtypeStruct((M, N), out_dtype),
            grid=(M // tm,),
            in_specs=[
                pl.BlockSpec((tm, K1), lambda i: (i, 0)),
                pl.BlockSpec((K1, Hd), lambda i: (0, 0)),
                pl.BlockSpec((1, Hd), lambda i: (0, 0)),
                pl.BlockSpec((Hd, N), lambda i: (0, 0)),
                pl.BlockSpec((1, N), lambda i: (0, 0)),
            ],
            out_specs=pl.BlockSpec((tm, N), lambda i: (i, 0)),
            compiler_params=pltpu.CompilerParams(
                dimension_semantics=("parallel",),
                vmem_limit_bytes=_vmem_limit(need),
            ),
        )(x, w1, b1_2d, w2, b2_2d)

    # Fallback for very large weights: two tiled GEMMs (h kept in compute dtype).
    h = matmul_bias(x, w1, b1_2d, apply_relu=True, out_dtype=x.dtype)
    return matmul_bias(h, w2, b2_2d, out_dtype=out_dtype)


# ----------------------------------------------------------------------------
# 3x3 "same" conv head (stride 1, pad 1), computed directly in NCHW.
# Spatial (H*W, padded to 128) is the lane axis; channels (padded to 8/16)
# ride the sublanes.  im2col taps live in a VMEM scratch; one GEMM per step.
# ----------------------------------------------------------------------------
def _tap_mask(H, W, HWp):
    """(9, HWp) float32: validity of each of the 9 taps at every output lane."""
    pos = jnp.arange(HWp, dtype=jnp.int32)
    row, col = pos // W, pos % W
    inb = pos < H * W
    rows = []
    for kh in range(3):
        for kw in range(3):
            dh, dw = kh - 1, kw - 1
            rows.append(inb & (row + dh >= 0) & (row + dh < H)
                        & (col + dw >= 0) & (col + dw < W))
    return jnp.stack(rows).astype(jnp.float32)


def _build_taps(taps_ref, img, mask, *, W, HWp, Cp, bcol):
    """Fill taps_ref[:, bcol:bcol+HWp] with the 9 shifted taps of img (Cp,HWp)."""
    for t in range(9):
        dh, dw = t // 3 - 1, t % 3 - 1
        off = dh * W + dw
        shifted = img if off == 0 else pltpu.roll(img, shift=(-off) % HWp, axis=1)
        taps_ref[t * Cp:(t + 1) * Cp, bcol:bcol + HWp] = shifted * mask[t:t + 1, :]


def _conv3x3_kernel(mask_ref, x_ref, w_ref, b_ref, o_ref, taps_ref,
                    *, W, HWp, Cp, Bt):
    mask = mask_ref[...].astype(x_ref.dtype)
    for b in range(Bt):
        _build_taps(taps_ref, x_ref[b], mask, W=W, HWp=HWp, Cp=Cp, bcol=b * HWp)
    y = jnp.dot(w_ref[...], taps_ref[...], preferred_element_type=jnp.float32)
    bias = b_ref[...]
    for b in range(Bt):
        o_ref[b] = (y[:, b * HWp:(b + 1) * HWp] + bias).astype(o_ref.dtype)


def _conv3x3x2_kernel(mask_ref, x_ref, w1_ref, b1_ref, w2_ref, b2_ref, o_ref,
                      taps1_ref, taps2_ref, *, W, HWp, Cp1, Cp2, Bt):
    mask1 = mask_ref[...].astype(x_ref.dtype)
    for b in range(Bt):
        _build_taps(taps1_ref, x_ref[b], mask1, W=W, HWp=HWp, Cp=Cp1, bcol=b * HWp)
    h = jnp.dot(w1_ref[...], taps1_ref[...], preferred_element_type=jnp.float32)
    h = jnp.maximum(h + b1_ref[...], 0.0).astype(taps2_ref.dtype)
    mask2 = mask_ref[...].astype(taps2_ref.dtype)
    for b in range(Bt):
        _build_taps(taps2_ref, h[:, b * HWp:(b + 1) * HWp], mask2,
                    W=W, HWp=HWp, Cp=Cp2, bcol=b * HWp)
    y = jnp.dot(w2_ref[...], taps2_ref[...], preferred_element_type=jnp.float32)
    bias2 = b2_ref[...]
    for b in range(Bt):
        o_ref[b] = (y[:, b * HWp:(b + 1) * HWp] + bias2).astype(o_ref.dtype)


def _flatten_conv_weight(w, cin_pad, cout_pad=None):
    # HWIO (3,3,Cin,Cout) -> (Cout_pad, 9*Cin_pad); tap-major / channel-minor.
    kh, kw, ci, co = w.shape
    cop = cout_pad or co
    wt = jnp.transpose(w, (3, 0, 1, 2)).reshape(co, kh * kw, ci)
    wt = jnp.pad(wt, ((0, cop - co), (0, 0), (0, cin_pad - ci)))
    return wt.reshape(cop, kh * kw * cin_pad).astype(jnp.float32)


def conv3x3_head(x, w1f, b1c, w2f=None, b2c=None, *, cin_pad, mid_pad=None):
    """3x3 'same' conv head (NCHW).  If w2f/b2c given: conv->ReLU->conv fused."""
    B, C, H, W = x.shape
    HW = H * W
    HWp = _round_up(HW, 128)
    Cp1 = cin_pad
    two = w2f is not None
    Cp2 = mid_pad if two else 0
    co_out = (w2f if two else w1f).shape[0]
    x_isz = x.dtype.itemsize
    h_isz = w2f.dtype.itemsize if two else 0

    w1f = w1f.astype(x.dtype)

    def need(bt):
        n = 9 * Cp1 * bt * HWp * x_isz                          # taps1 scratch
        if two:
            n += 9 * Cp2 * bt * HWp * h_isz                     # taps2 scratch
        n += 2 * bt * Cp1 * HWp * x_isz                         # input (2x buf)
        n += 2 * bt * co_out * HWp * x_isz                      # output (2x buf)
        n += 2 * (w1f.size * x_isz + (w2f.size * h_isz if two else 0))
        n += 2 * 9 * HWp * 4                                    # tap mask
        n += 8192                                               # biases / slack
        return n

    cands = [bt for bt in (8, 4, 2, 1) if B % bt == 0 and need(bt) <= _VMEM_BUDGET]
    if not cands:
        # TODO(synk): spatially tile H*W (multiples of 128 with a 1-row halo) for
        # feature maps whose per-image im2col taps exceed the VMEM budget
        # (matters most on v7x with 64 MiB of VMEM).
        raise NotImplementedError("conv head: im2col taps exceed the VMEM budget")
    # Prefer leaving >= 2 grid steps so v7x's second TensorCore has work.
    pref = [bt for bt in cands if B // bt >= 2]
    Bt = pref[0] if pref else cands[0]

    # Lane-pad spatial to 128 and sublane-pad channels to Cp1 (zeros).
    x3 = jnp.pad(x.reshape(B, C, HW), ((0, 0), (0, Cp1 - C), (0, HWp - HW)))
    mask = _tap_mask(H, W, HWp)

    grid = (B // Bt,)
    common_in = [
        pl.BlockSpec((9, HWp), lambda b: (0, 0)),
        pl.BlockSpec((Bt, Cp1, HWp), lambda b: (b, 0, 0)),
        pl.BlockSpec(w1f.shape, lambda b: (0, 0)),
        pl.BlockSpec(b1c.shape, lambda b: (0, 0)),
    ]
    out_spec = pl.BlockSpec((Bt, co_out, HWp), lambda b: (b, 0, 0))
    cparams = pltpu.CompilerParams(
        dimension_semantics=("parallel",),
        vmem_limit_bytes=_vmem_limit(need(Bt)),
    )

    if not two:
        y = pl.pallas_call(
            functools.partial(_conv3x3_kernel, W=W, HWp=HWp, Cp=Cp1, Bt=Bt),
            out_shape=jax.ShapeDtypeStruct((B, co_out, HWp), x.dtype),
            grid=grid,
            in_specs=common_in,
            out_specs=out_spec,
            scratch_shapes=[pltpu.VMEM((9 * Cp1, Bt * HWp), x.dtype)],
            compiler_params=cparams,
        )(mask, x3, w1f, b1c)
    else:
        y = pl.pallas_call(
            functools.partial(_conv3x3x2_kernel, W=W, HWp=HWp,
                              Cp1=Cp1, Cp2=Cp2, Bt=Bt),
            out_shape=jax.ShapeDtypeStruct((B, co_out, HWp), x.dtype),
            grid=grid,
            in_specs=common_in + [
                pl.BlockSpec(w2f.shape, lambda b: (0, 0)),
                pl.BlockSpec(b2c.shape, lambda b: (0, 0)),
            ],
            out_specs=out_spec,
            scratch_shapes=[pltpu.VMEM((9 * Cp1, Bt * HWp), x.dtype),
                            pltpu.VMEM((9 * Cp2, Bt * HWp), w2f.dtype)],
            compiler_params=cparams,
        )(mask, x3, w1f, b1c, w2f, b2c)

    return y[:, :, :HW].reshape(B, co_out, H, W)


# ------------------------------ module wrapper ------------------------------
def _uniform(key, shape, bound):
    return jax.random.uniform(key, shape, jnp.float32, -bound, bound)


class ProjectionHead:
    """JAX/Pallas port of the PyTorch ProjectionHead (deterministic init).

    compute_dtype: optional (e.g. jnp.bfloat16) streaming dtype for linear/mlp.
    conv_compute_dtype: optional bf16 for the second conv of the conv_2 head.
    """

    def __init__(self, in_channels=None, input_size=None, in_features=None,
                 out_features=None, head_type='linear', *, key,
                 compute_dtype=None, conv_compute_dtype=None):
        self.head_type = head_type
        self.params = {}
        self._prep = {}
        if head_type == 'identity':
            return
        if (in_channels is not None and input_size is not None
                and in_features is not None):
            if in_channels * input_size * input_size != in_features:
                raise ValueError('Invalid input arguments.')
        if in_features is None:
            in_features = in_channels * input_size * input_size

        if head_type in ('conv', 'conv_2'):
            C = in_channels
            bound = 1.0 / (C * 9) ** 0.5
            Cp1 = _round_up(C, 8)
            if head_type == 'conv':
                k1, k2 = jax.random.split(key, 2)
                w1 = _uniform(k1, (3, 3, C, C), bound)
                b1 = _uniform(k2, (C,), bound)
                self.params = dict(w1=w1, b1=b1)
                self._prep = dict(
                    cin_pad=Cp1,
                    w1f=_flatten_conv_weight(w1, Cp1),
                    b1c=b1.astype(jnp.float32).reshape(C, 1))
            else:
                k1, k2, k3, k4 = jax.random.split(key, 4)
                w1 = _uniform(k1, (3, 3, C, C), bound)
                b1 = _uniform(k2, (C,), bound)
                w2 = _uniform(k3, (3, 3, C, C), bound)
                b2 = _uniform(k4, (C,), bound)
                self.params = dict(w1=w1, b1=b1, w2=w2, b2=b2)
                h_dtype = conv_compute_dtype or jnp.float32
                # bf16 taps pack 16 rows/vreg -> align intermediate channels to 16.
                mult = 8 * (4 // jnp.dtype(h_dtype).itemsize)
                Cp2 = _round_up(C, mult)
                self._prep = dict(
                    cin_pad=Cp1, mid_pad=Cp2,
                    w1f=_flatten_conv_weight(w1, Cp1, cout_pad=Cp2),
                    b1c=jnp.pad(b1, (0, Cp2 - C)).astype(jnp.float32).reshape(Cp2, 1),
                    w2f=_flatten_conv_weight(w2, Cp2).astype(h_dtype),
                    b2c=b2.astype(jnp.float32).reshape(C, 1))
        elif head_type == 'linear':
            bound = 1.0 / in_features ** 0.5
            k1, k2 = jax.random.split(key, 2)
            w = _uniform(k1, (in_features, out_features), bound)
            b = _uniform(k2, (out_features,), bound)
            self.params = dict(w=w, b=b)
            cd = compute_dtype or jnp.float32
            self._prep = dict(w=w.astype(cd),
                              b2d=b.astype(jnp.float32).reshape(1, out_features))
        elif head_type == 'mlp':
            bound = 1.0 / in_features ** 0.5
            k1, k2, k3, k4 = jax.random.split(key, 4)
            w1 = _uniform(k1, (in_features, in_features), bound)
            b1 = _uniform(k2, (in_features,), bound)
            w2 = _uniform(k3, (in_features, out_features), bound)
            b2 = _uniform(k4, (out_features,), bound)
            self.params = dict(w1=w1, b1=b1, w2=w2, b2=b2)
            cd = compute_dtype or jnp.float32
            self._prep = dict(
                w1=w1.astype(cd),
                b1_2d=b1.astype(jnp.float32).reshape(1, in_features),
                w2=w2.astype(cd),
                b2_2d=b2.astype(jnp.float32).reshape(1, out_features))
        else:
            raise ValueError('Invalid head type: {}'.format(head_type))

    def __call__(self, x):
        if self.head_type == 'identity':
            return x
        p = self._prep
        if self.head_type == 'linear' or self.head_type.startswith('mlp'):
            if self.head_type == 'linear':
                xf = x.reshape(x.shape[0], -1).astype(p['w'].dtype)
                return matmul_bias(xf, p['w'], p['b2d'], out_dtype=x.dtype)
            xf = x.reshape(x.shape[0], -1).astype(p['w1'].dtype)
            return mlp_head(xf, p['w1'], p['b1_2d'], p['w2'], p['b2_2d'],
                            out_dtype=x.dtype)
        if self.head_type == 'conv':
            return conv3x3_head(x, p['w1f'], p['b1c'], cin_pad=p['cin_pad'])
        # conv_2: fused conv -> ReLU -> conv in a single pallas_call.
        return conv3x3_head(x, p['w1f'], p['b1c'], p['w2f'], p['b2c'],
                            cin_pad=p['cin_pad'], mid_pad=p['mid_pad'])


# --------------------------- pure-JAX reference ---------------------------
def _reference(head, x):
    p = head.params
    if head.head_type == 'identity':
        return x
    if head.head_type == 'linear':
        return x.reshape(x.shape[0], -1) @ p['w'] + p['b']
    if head.head_type == 'mlp':
        h = x.reshape(x.shape[0], -1) @ p['w1'] + p['b1']
        h = jnp.maximum(h, 0.0)
        return h @ p['w2'] + p['b2']

    def conv(z, w, b):
        y = jax.lax.conv_general_dilated(
            z, w, (1, 1), ((1, 1), (1, 1)),
            dimension_numbers=('NCHW', 'HWIO', 'NCHW'))
        return y + b[None, :, None, None]

    y = conv(x, p['w1'], p['b1'])
    if head.head_type == 'conv_2':
        y = conv(jnp.maximum(y, 0.0), p['w2'], p['b2'])
    return y


if __name__ == "__main__":
    key = jax.random.PRNGKey(0)
    kx, kl, km, kc1, kc2 = jax.random.split(key, 5)

    B, C, S = 2, 4, 16
    OUT = 32
    x = jax.random.normal(kx, (B, C, S, S), jnp.float32)

    heads = {
        'identity': ProjectionHead(head_type='identity', key=kl),
        'linear': ProjectionHead(in_channels=C, input_size=S,
                                 in_features=C * S * S, out_features=OUT,
                                 head_type='linear', key=kl),
        'mlp': ProjectionHead(in_channels=C, input_size=S, out_features=OUT,
                              head_type='mlp', key=km),
        'conv': ProjectionHead(in_channels=C, input_size=S,
                               head_type='conv', key=kc1),
        'conv_2': ProjectionHead(in_channels=C, input_size=S,
                                 head_type='conv_2', key=kc2),
    }

    for name, head in heads.items():
        y = jax.block_until_ready(head(x))
        y_ref = jax.block_until_ready(_reference(head, x))
        assert y.shape == y_ref.shape, (name, y.shape, y_ref.shape)
        assert jnp.allclose(y, y_ref, rtol=2e-2, atol=2e-2), name

    # bf16 streaming mode (HBM-bound GEMMs / second conv): same parameters
    # (same keys, init in f32), looser tolerance for the bf16 rounding.
    bf16_heads = {
        'linear': ProjectionHead(in_channels=C, input_size=S,
                                 in_features=C * S * S, out_features=OUT,
                                 head_type='linear', key=kl,
                                 compute_dtype=jnp.bfloat16),
        'mlp': ProjectionHead(in_channels=C, input_size=S, out_features=OUT,
                              head_type='mlp', key=km,
                              compute_dtype=jnp.bfloat16),
        'conv_2': ProjectionHead(in_channels=C, input_size=S,
                                 head_type='conv_2', key=kc2,
                                 conv_compute_dtype=jnp.bfloat16),
    }
    for name, head in bf16_heads.items():
        y = jax.block_until_ready(head(x))
        y_ref = jax.block_until_ready(_reference(head, x))
        assert jnp.allclose(y, y_ref, rtol=5e-2, atol=5e-2), name + '_bf16'

    print("KERNEL_OK")
</pallas_src>

<mosaic_0001>
module attributes {stable_mosaic.version = 11 : i64} {
  func.func @_matmul_bias_kernel(%arg0: i32, %arg1: i32, %arg2: i32, %arg3: memref<2x1024xf32, #tpu.memory_space<vmem>>, %arg4: memref<1024x32xf32, #tpu.memory_space<vmem>>, %arg5: memref<1x32xf32, #tpu.memory_space<vmem>>, %arg6: memref<2x32xf32, #tpu.memory_space<vmem>>, %arg7: memref<2x32xf32, #tpu.memory_space<vmem>>) attributes {dimension_semantics = [#tpu.dimension_semantics<parallel>, #tpu.dimension_semantics<parallel>, #tpu.dimension_semantics<arbitrary>], iteration_bounds = array<i64: 1, 1, 1>, scalar_prefetch = 0 : i64, scratch_operands = 1 : i64, tpu.core_type = #tpu.core_type<tc>, window_params = [{transform_indices = @transform_0, window_bounds = array<i64: 2, 1024>}, {transform_indices = @transform_1, window_bounds = array<i64: 1024, 32>}, {transform_indices = @transform_2, window_bounds = array<i64: 1, 32>}, {transform_indices = @transform_3, window_bounds = array<i64: 2, 32>}]} {
    %c0_i32 = arith.constant 0 : i32
    %0 = arith.cmpi eq, %arg2, %c0_i32 : i32
    %1 = arith.extui %0 : i1 to i32
    %c0_i32_0 = arith.constant 0 : i32
    %2 = arith.cmpi ne, %1, %c0_i32_0 : i32
    scf.if %2 {
      %cst_10 = arith.constant 0.000000e+00 : f32
      %12 = vector.broadcast %cst_10 : f32 to vector<2x32xf32>
      %c0_11 = arith.constant 0 : index
      %c0_12 = arith.constant 0 : index
      %13 = vector.load %arg7[%c0_11, %c0_12] : memref<2x32xf32, #tpu.memory_space<vmem>>, vector<2x32xf32>
      tpu.vector_store %arg7[%c0_11, %c0_12], %12 {strides = array<i32>} : memref<2x32xf32, #tpu.memory_space<vmem>>, vector<2x32xf32>,
    } else {
    }
    %c0 = arith.constant 0 : index
    %c0_1 = arith.constant 0 : index
    %3 = vector.load %arg7[%c0, %c0_1] : memref<2x32xf32, #tpu.memory_space<vmem>>, vector<2x32xf32>
    %c0_2 = arith.constant 0 : index
    %c0_3 = arith.constant 0 : index
    %4 = vector.load %arg3[%c0_2, %c0_3] : memref<2x1024xf32, #tpu.memory_space<vmem>>, vector<2x1024xf32>
    %c0_4 = arith.constant 0 : index
    %c0_5 = arith.constant 0 : index
    %5 = vector.load %arg4[%c0_4, %c0_5] : memref<1024x32xf32, #tpu.memory_space<vmem>>, vector<1024x32xf32>
    %cst = arith.constant dense<0.000000e+00> : vector<2x32xf32>
    %6 = tpu.matmul %4, %5, %cst {dimension_numbers = #tpu.dot_dimension_numbers<[1], [0], [0], [1], [0, 0, 1, 1], [], []>} : vector<2x1024xf32>, vector<1024x32xf32>, vector<2x32xf32> -> vector<2x32xf32>
    %7 = arith.addf %3, %6 : vector<2x32xf32>
    %c0_6 = arith.constant 0 : index
    %c0_7 = arith.constant 0 : index
    %8 = vector.load %arg7[%c0_6, %c0_7] : memref<2x32xf32, #tpu.memory_space<vmem>>, vector<2x32xf32>
    tpu.vector_store %arg7[%c0_6, %c0_7], %7 {strides = array<i32>} : memref<2x32xf32, #tpu.memory_space<vmem>>, vector<2x32xf32>,
    %c0_i32_8 = arith.constant 0 : i32
    %9 = arith.cmpi eq, %arg2, %c0_i32_8 : i32
    %10 = arith.extui %9 : i1 to i32
    %c0_i32_9 = arith.constant 0 : i32
    %11 = arith.cmpi ne, %10, %c0_i32_9 : i32
    scf.if %11 {
      %c0_10 = arith.constant 0 : index
      %c0_11 = arith.constant 0 : index
      %12 = vector.load %arg7[%c0_10, %c0_11] : memref<2x32xf32, #tpu.memory_space<vmem>>, vector<2x32xf32>
      %c0_12 = arith.constant 0 : index
      %c0_13 = arith.constant 0 : index
      %13 = vector.load %arg5[%c0_12, %c0_13] : memref<1x32xf32, #tpu.memory_space<vmem>>, vector<1x32xf32>
      %14 = vector.broadcast %13 : vector<1x32xf32> to vector<2x32xf32>
      %15 = arith.addf %12, %14 : vector<2x32xf32>
      %c0_14 = arith.constant 0 : index
      %c0_15 = arith.constant 0 : index
      %16 = vector.load %arg6[%c0_14, %c0_15] : memref<2x32xf32, #tpu.memory_space<vmem>>, vector<2x32xf32>
      tpu.vector_store %arg6[%c0_14, %c0_15], %15 {strides = array<i32>} : memref<2x32xf32, #tpu.memory_space<vmem>>, vector<2x32xf32>,
    } else {
    }
    return
  }
  func.func @transform_0(%arg0: i32, %arg1: i32, %arg2: i32) -> (i32, i32) {
    %c0_i32 = arith.constant 0 : i32
    return %arg0, %arg2 : i32, i32
  }
  func.func @transform_1(%arg0: i32, %arg1: i32, %arg2: i32) -> (i32, i32) {
    %c0_i32 = arith.constant 0 : i32
    return %arg2, %arg1 : i32, i32
  }
  func.func @transform_2(%arg0: i32, %arg1: i32, %arg2: i32) -> (i32, i32) {
    %c0_i32 = arith.constant 0 : i32
    %c0_i32_0 = arith.constant 0 : i32
    return %c0_i32, %arg1 : i32, i32
  }
  func.func @transform_3(%arg0: i32, %arg1: i32, %arg2: i32) -> (i32, i32) {
    %c0_i32 = arith.constant 0 : i32
    return %arg0, %arg1 : i32, i32
  }
}

</mosaic_0001>

<llo_original>
// kernel: tpu_custom_call.1
$region0: #{tpu_custom_call.1}
  #allocation0 [shape = 'u32[]', space=smem, size = 0x4, offset = 0x4, fixed_abs, tag = 'smem constant byte address 0x4 - core index']
  #allocation1 [shape = 'u32[144,128]{1,0:T(1,128)}', space=vmem, size = 0x12000, scoped, tag = 'internal scratch']
  #allocation2 [shape = 'f32[2,32]{1,0:T(2,128)}', space=vmem, size = 0x400, scoped, tag = 'scratch operand']
  %s0 = inlined_call_operand.vmem [shape: f32[2,1024], index: 0, kind: input, shape index: {}]
  %s1 = inlined_call_operand.vmem [shape: f32[1024,32], index: 1, kind: input, shape index: {}]
  %s2 = inlined_call_operand.vmem [shape: f32[1,32], index: 2, kind: input, shape index: {}]
  %s3 = inlined_call_operand.hbm [shape: f32[2,32], index: 3, kind: output, shape index: {}]
  %s4 = sld [smem:[#allocation0]]
  $region30: #{tpu_custom_call.1} parent=0
    _
  %s6 = ssub.s32 1, %s4
  %s7 = scalar_select 0, %s6, %s4
  $region1: #{tpu_custom_call.1} parent=0
    #allocation3 [shape = 'u8[1024]{0}', space=vmem, size = 0x400, scoped, tag = 'output window, operand 0, single buffered']
    #allocation4 [shape = 's32[1]{0}', space=sflag, size = 0x4, scoped, tag = 'scoped memory for tpu_custom_call.1']
    %8 = vsyncpa [#allocation4], 0
    // Predicated region
    $region2: #{tpu_custom_call.1} parent=1 // pred_check
      _
    $region3: #{tpu_custom_call.1} parent=1 // pred_check_branch
      %10 = sbr.rel (0) target = $region5
    $region4: #{tpu_custom_call.1} parent=1 // pred_region
      _
    $region5: #{tpu_custom_call.1} parent=1 // pred_fallthru
      _
    // Predicated region
    $region6: #{tpu_custom_call.1} parent=1 // pred_check
      _
    $region7: #{tpu_custom_call.1} parent=1 // pred_check_branch
      %12 = sbr.rel (0) target = $region9
    $region8: #{tpu_custom_call.1} parent=1 // pred_region
      _
    $region9: #{tpu_custom_call.1} parent=1 // pred_fallthru
      _
    // Predicated region
    $region10: #{tpu_custom_call.1} parent=1 // pred_check
      _
    $region11: #{tpu_custom_call.1} parent=1 // pred_check_branch
      %14 = sbr.rel (0) target = $region13
    $region12: #{tpu_custom_call.1} parent=1 // pred_region
      _
    $region13: #{tpu_custom_call.1} parent=1 // pred_fallthru
      _
    %p15 = scmp.eq.s32.totalorder 0, 0
    // Predicated region
    $region14: #{tpu_custom_call.1} parent=1 // pred_check
      %p16 = pneg %p15
    $region15: #{tpu_custom_call.1} parent=1 // pred_check_branch
      %18 = sbr.rel (%p16) target = $region17
    $region16: #{tpu_custom_call.1} parent=1 // pred_region
      %vm19 = vcmask 254976
      %20 = vst.msk [vmem:[#allocation2] sm:$0x3] %vm19, 0.0
    $region17: #{tpu_custom_call.1} parent=1 // pred_fallthru
      _
    %v21 = vld [vmem:[#allocation2] sm:$0x3]
    %v22 = vld [vmem:[%s0] sm:$0xff]
    %v23 = vld [vmem:[%s0 + $0x8] sm:$0xff]
    %v24 = vld [vmem:[%s1] sm:$0xff]
    %v25 = vld [vmem:[%s1 + $0x8] sm:$0xff]
    %v26 = vld [vmem:[%s1 + $0x10] sm:$0xff]
    %v27 = vld [vmem:[%s1 + $0x18] sm:$0xff]
    %v28 = vld [vmem:[%s1 + $0x20] sm:$0xff]
    %v29 = vld [vmem:[%s1 + $0x28] sm:$0xff]
    %v30 = vld [vmem:[%s1 + $0x30] sm:$0xff]
    %v31 = vld [vmem:[%s1 + $0x38] sm:$0xff]
    %v32 = vld [vmem:[%s1 + $0x40] sm:$0xff]
    %v33 = vld [vmem:[%s1 + $0x48] sm:$0xff]
    %v34 = vld [vmem:[%s1 + $0x50] sm:$0xff]
    %v35 = vld [vmem:[%s1 + $0x58] sm:$0xff]
    %v36 = vld [vmem:[%s1 + $0x60] sm:$0xff]
    %v37 = vld [vmem:[%s1 + $0x68] sm:$0xff]
    %v38 = vld [vmem:[%s1 + $0x70] sm:$0xff]
    %v39 = vld [vmem:[%s1 + $0x78] sm:$0xff]
    %v40 = vld [vmem:[%s1 + $0x80] sm:$0xff]
    %v41 = vld [vmem:[%s1 + $0x88] sm:$0xff]
    %v42 = vld [vmem:[%s1 + $0x90] sm:$0xff]
    %v43 = vld [vmem:[%s1 + $0x98] sm:$0xff]
    %v44 = vld [vmem:[%s1 + $0xa0] sm:$0xff]
    %v45 = vld [vmem:[%s1 + $0xa8] sm:$0xff]
    %v46 = vld [vmem:[%s1 + $0xb0] sm:$0xff]
    %v47 = vld [vmem:[%s1 + $0xb8] sm:$0xff]
    %v48 = vld [vmem:[%s1 + $0xc0] sm:$0xff]
    %v49 = vld [vmem:[%s1 + $0xc8] sm:$0xff]
    %v50 = vld [vmem:[%s1 + $0xd0] sm:$0xff]
    %v51 = vld [vmem:[%s1 + $0xd8] sm:$0xff]
    %v52 = vld [vmem:[%s1 + $0xe0] sm:$0xff]
    %v53 = vld [vmem:[%s1 + $0xe8] sm:$0xff]
    %v54 = vld [vmem:[%s1 + $0xf0] sm:$0xff]
    %v55 = vld [vmem:[%s1 + $0xf8] sm:$0xff]
    %v56 = vld [vmem:[%s1 + $0x100] sm:$0xff]
    %v57 = vld [vmem:[%s1 + $0x108] sm:$0xff]
    %v58 = vld [vmem:[%s1 + $0x110] sm:$0xff]
    %v59 = vld [vmem:[%s1 + $0x118] sm:$0xff]
    %v60 = vld [vmem:[%s1 + $0x120] sm:$0xff]
    %v61 = vld [vmem:[%s1 + $0x128] sm:$0xff]
    %v62 = vld [vmem:[%s1 + $0x130] sm:$0xff]
    %v63 = vld [vmem:[%s1 + $0x138] sm:$0xff]
    %v64 = vld [vmem:[%s1 + $0x140] sm:$0xff]
    %v65 = vld [vmem:[%s1 + $0x148] sm:$0xff]
    %v66 = vld [vmem:[%s1 + $0x150] sm:$0xff]
    %v67 = vld [vmem:[%s1 + $0x158] sm:$0xff]
    %v68 = vld [vmem:[%s1 + $0x160] sm:$0xff]
    %v69 = vld [vmem:[%s1 + $0x168] sm:$0xff]
    %v70 = vld [vmem:[%s1 + $0x170] sm:$0xff]
    %v71 = vld [vmem:[%s1 + $0x178] sm:$0xff]
    %v72 = vld [vmem:[%s1 + $0x180] sm:$0xff]
    %v73 = vld [vmem:[%s1 + $0x188] sm:$0xff]
    %v74 = vld [vmem:[%s1 + $0x190] sm:$0xff]
    %v75 = vld [vmem:[%s1 + $0x198] sm:$0xff]
    %v76 = vld [vmem:[%s1 + $0x1a0] sm:$0xff]
    %v77 = vld [vmem:[%s1 + $0x1a8] sm:$0xff]
    %v78 = vld [vmem:[%s1 + $0x1b0] sm:$0xff]
    %v79 = vld [vmem:[%s1 + $0x1b8] sm:$0xff]
    %v80 = vld [vmem:[%s1 + $0x1c0] sm:$0xff]
    %v81 = vld [vmem:[%s1 + $0x1c8] sm:$0xff]
    %v82 = vld [vmem:[%s1 + $0x1d0] sm:$0xff]
    %v83 = vld [vmem:[%s1 + $0x1d8] sm:$0xff]
    %v84 = vld [vmem:[%s1 + $0x1e0] sm:$0xff]
    %v85 = vld [vmem:[%s1 + $0x1e8] sm:$0xff]
    %v86 = vld [vmem:[%s1 + $0x1f0] sm:$0xff]
    %v87 = vld [vmem:[%s1 + $0x1f8] sm:$0xff]
    %v88 = vld [vmem:[%s1 + $0x200] sm:$0xff]
    %v89 = vld [vmem:[%s1 + $0x208] sm:$0xff]
    %v90 = vld [vmem:[%s1 + $0x210] sm:$0xff]
    %v91 = vld [vmem:[%s1 + $0x218] sm:$0xff]
    %v92 = vld [vmem:[%s1 + $0x220] sm:$0xff]
    %v93 = vld [vmem:[%s1 + $0x228] sm:$0xff]
    %v94 = vld [vmem:[%s1 + $0x230] sm:$0xff]
    %v95 = vld [vmem:[%s1 + $0x238] sm:$0xff]
    %v96 = vld [vmem:[%s1 + $0x240] sm:$0xff]
    %v97 = vld [vmem:[%s1 + $0x248] sm:$0xff]
    %v98 = vld [vmem:[%s1 + $0x250] sm:$0xff]
    %v99 = vld [vmem:[%s1 + $0x258] sm:$0xff]
    %v100 = vld [vmem:[%s1 + $0x260] sm:$0xff]
    %v101 = vld [vmem:[%s1 + $0x268] sm:$0xff]
    %v102 = vld [vmem:[%s1 + $0x270] sm:$0xff]
    %v103 = vld [vmem:[%s1 + $0x278] sm:$0xff]
    %v104 = vld [vmem:[%s1 + $0x280] sm:$0xff]
    %v105 = vld [vmem:[%s1 + $0x288] sm:$0xff]
    %v106 = vld [vmem:[%s1 + $0x290] sm:$0xff]
    %v107 = vld [vmem:[%s1 + $0x298] sm:$0xff]
    %v108 = vld [vmem:[%s1 + $0x2a0] sm:$0xff]
    %v109 = vld [vmem:[%s1 + $0x2a8] sm:$0xff]
    %v110 = vld [vmem:[%s1 + $0x2b0] sm:$0xff]
    %v111 = vld [vmem:[%s1 + $0x2b8] sm:$0xff]
    %v112 = vld [vmem:[%s1 + $0x2c0] sm:$0xff]
    %v113 = vld [vmem:[%s1 + $0x2c8] sm:$0xff]
    %v114 = vld [vmem:[%s1 + $0x2d0] sm:$0xff]
    %v115 = vld [vmem:[%s1 + $0x2d8] sm:$0xff]
    %v116 = vld [vmem:[%s1 + $0x2e0] sm:$0xff]
    %v117 = vld [vmem:[%s1 + $0x2e8] sm:$0xff]
    %v118 = vld [vmem:[%s1 + $0x2f0] sm:$0xff]
    %v119 = vld [vmem:[%s1 + $0x2f8] sm:$0xff]
    %v120 = vld [vmem:[%s1 + $0x300] sm:$0xff]
    %v121 = vld [vmem:[%s1 + $0x308] sm:$0xff]
    %v122 = vld [vmem:[%s1 + $0x310] sm:$0xff]
    %v123 = vld [vmem:[%s1 + $0x318] sm:$0xff]
    %v124 = vld [vmem:[%s1 + $0x320] sm:$0xff]
    %v125 = vld [vmem:[%s1 + $0x328] sm:$0xff]
    %v126 = vld [vmem:[%s1 + $0x330] sm:$0xff]
    %v127 = vld [vmem:[%s1 + $0x338] sm:$0xff]
    %v128 = vld [vmem:[%s1 + $0x340] sm:$0xff]
    %v129 = vld [vmem:[%s1 + $0x348] sm:$0xff]
    %v130 = vld [vmem:[%s1 + $0x350] sm:$0xff]
    %v131 = vld [vmem:[%s1 + $0x358] sm:$0xff]
    %v132 = vld [vmem:[%s1 + $0x360] sm:$0xff]
    %v133 = vld [vmem:[%s1 + $0x368] sm:$0xff]
    %v134 = vld [vmem:[%s1 + $0x370] sm:$0xff]
    %v135 = vld [vmem:[%s1 + $0x378] sm:$0xff]
    %v136 = vld [vmem:[%s1 + $0x380] sm:$0xff]
    %v137 = vld [vmem:[%s1 + $0x388] sm:$0xff]
    %v138 = vld [vmem:[%s1 + $0x390] sm:$0xff]
    %v139 = vld [vmem:[%s1 + $0x398] sm:$0xff]
    %v140 = vld [vmem:[%s1 + $0x3a0] sm:$0xff]
    %v141 = vld [vmem:[%s1 + $0x3a8] sm:$0xff]
    %v142 = vld [vmem:[%s1 + $0x3b0] sm:$0xff]
    %v143 = vld [vmem:[%s1 + $0x3b8] sm:$0xff]
    %v144 = vld [vmem:[%s1 + $0x3c0] sm:$0xff]
    %v145 = vld [vmem:[%s1 + $0x3c8] sm:$0xff]
    %v146 = vld [vmem:[%s1 + $0x3d0] sm:$0xff]
    %v147 = vld [vmem:[%s1 + $0x3d8] sm:$0xff]
    %v148 = vld [vmem:[%s1 + $0x3e0] sm:$0xff]
    %v149 = vld [vmem:[%s1 + $0x3e8] sm:$0xff]
    %v150 = vld [vmem:[%s1 + $0x3f0] sm:$0xff]
    %v151 = vld [vmem:[%s1 + $0x3f8] sm:$0xff]
    %v154 = vcombine.high %v22, %v22
    %v156 = vunpack.c.l.s4 1983009808
    %v157 = vunpack.c.0.s8 %v156
    %v158 = vlaneseq
    %v159 = vshrl.u32 %v158, 7
    %v160 = vsub.s32 %v157, %v159
    %v161 = vrot.slane %v22, %v160
    %v163 = vunpack.c.l.s4 1983009808
    %v164 = vunpack.c.0.s8 %v163
    %v165 = vlaneseq
    %v166 = vshrl.u32 %v165, 7
    %v167 = vsub.s32 %v164, %v166
    %v168 = vrot.slane %v154, %v167
    %v169 = vcombine.high %v161, %v161
    %v170 = vcombine.high %v168, %v168
    %v171 = vcombine.high %v23, %v23
    %v173 = vunpack.c.l.s4 1983009808
    %v174 = vunpack.c.0.s8 %v173
    %v175 = vlaneseq
    %v176 = vshrl.u32 %v175, 7
    %v177 = vsub.s32 %v174, %v176
    %v178 = vrot.slane %v23, %v177
    %v180 = vunpack.c.l.s4 1983009808
    %v181 = vunpack.c.0.s8 %v180
    %v182 = vlaneseq
    %v183 = vshrl.u32 %v182, 7
    %v184 = vsub.s32 %v181, %v183
    %v185 = vrot.slane %v171, %v184
    %v186 = vcombine.high %v178, %v178
    %v187 = vcombine.high %v185, %v185
    %196 = vmatprep.subr.mxu0 0.0
    %197 = vmatpush1.msra.mxu0 %v24
    %198 = vmatprep.subr.mxu0 0.0
    %199 = vmatpush1.msra.mxu0 %v25
    %200 = vmatprep.subr.mxu0 0.0
    %201 = vmatpush1.msra.mxu0 %v26
    %202 = vmatprep.subr.mxu0 0.0
    %203 = vmatpush1.msra.mxu0 %v27
    %204 = vmatprep.subr.mxu0 0.0
    %205 = vmatpush1.msra.mxu0 %v28
    %206 = vmatprep.subr.mxu0 0.0
    %207 = vmatpush1.msra.mxu0 %v29
    %208 = vmatprep.subr.mxu0 0.0
    %209 = vmatpush1.msra.mxu0 %v30
    %210 = vmatprep.subr.mxu0 0.0
    %211 = vmatpush1.msra.mxu0 %v31
    %212 = vmatprep.subr.mxu0 0.0
    %213 = vmatpush1.msra.mxu0 %v32
    %214 = vmatprep.subr.mxu0 0.0
    %215 = vmatpush1.msra.mxu0 %v33
    %216 = vmatprep.subr.mxu0 0.0
    %217 = vmatpush1.msra.mxu0 %v34
    %218 = vmatprep.subr.mxu0 0.0
    %219 = vmatpush1.msra.mxu0 %v35
    %220 = vmatprep.subr.mxu0 0.0
    %221 = vmatpush1.msra.mxu0 %v36
    %222 = vmatprep.subr.mxu0 0.0
    %223 = vmatpush1.msra.mxu0 %v37
    %224 = vmatprep.subr.mxu0 0.0
    %225 = vmatpush1.msra.mxu0 %v38
    %226 = vmatprep.subr.mxu0 0.0
    %227 = vmatpush1.msra.mxu0 %v39
    %228 = vmatprep.subr.mxu0 0.0
    %229 = vmatpush1.msra.mxu0 %v40
    %230 = vmatprep.subr.mxu0 0.0
    %231 = vmatpush1.msra.mxu0 %v41
    %232 = vmatprep.subr.mxu0 0.0
    %233 = vmatpush1.msra.mxu0 %v42
    %234 = vmatprep.subr.mxu0 0.0
    %235 = vmatpush1.msra.mxu0 %v43
    %236 = vmatprep.subr.mxu0 0.0
    %237 = vmatpush1.msra.mxu0 %v44
    %238 = vmatprep.subr.mxu0 0.0
    %239 = vmatpush1.msra.mxu0 %v45
    %240 = vmatprep.subr.mxu0 0.0
    %241 = vmatpush1.msra.mxu0 %v46
    %242 = vmatprep.subr.mxu0 0.0
    %243 = vmatpush1.msra.mxu0 %v47
    %244 = vmatprep.subr.mxu0 0.0
    %245 = vmatpush1.msra.mxu0 %v48
    %246 = vmatprep.subr.mxu0 0.0
    %247 = vmatpush1.msra.mxu0 %v49
    %248 = vmatprep.subr.mxu0 0.0
    %249 = vmatpush1.msra.mxu0 %v50
    %250 = vmatprep.subr.mxu0 0.0
    %251 = vmatpush1.msra.mxu0 %v51
    %252 = vmatprep.subr.mxu0 0.0
    %253 = vmatpush1.msra.mxu0 %v52
    %254 = vmatprep.subr.mxu0 0.0
    %255 = vmatpush1.msra.mxu0 %v53
    %256 = vmatprep.subr.mxu0 0.0
    %257 = vmatpush1.msra.mxu0 %v54
    %258 = vmatprep.subr.mxu0 0.0
    %259 = vmatpush1.msra.mxu0 %v55
    %260 = vmatprep.mubr.f32.mxu0 %v169
    %261 = vmatmul.mubr.f32.gmra.mrb[0].mxu0 %v161
    %v262 = vpop.f32.mrb[0].mxu0
    %v263 = vadd.f32 0.0, %v262
    %v264 = vpop.f32.mrb[0].mxu0
    %265 = vdwg.mxu0
    %266 = vmatprep.subr.mxu0 0.0
    %267 = vmatpush1.msra.mxu0 %v56
    %268 = vmatprep.subr.mxu0 0.0
    %269 = vmatpush1.msra.mxu0 %v57
    %270 = vmatprep.subr.mxu0 0.0
    %271 = vmatpush1.msra.mxu0 %v58
    %272 = vmatprep.subr.mxu0 0.0
    %273 = vmatpush1.msra.mxu0 %v59
    %274 = vmatprep.subr.mxu0 0.0
    %275 = vmatpush1.msra.mxu0 %v60
    %276 = vmatprep.subr.mxu0 0.0
    %277 = vmatpush1.msra.mxu0 %v61
    %278 = vmatprep.subr.mxu0 0.0
    %279 = vmatpush1.msra.mxu0 %v62
    %280 = vmatprep.subr.mxu0 0.0
    %281 = vmatpush1.msra.mxu0 %v63
    %282 = vmatprep.subr.mxu0 0.0
    %283 = vmatpush1.msra.mxu0 %v64
    %284 = vmatprep.subr.mxu0 0.0
    %285 = vmatpush1.msra.mxu0 %v65
    %286 = vmatprep.subr.mxu0 0.0
    %287 = vmatpush1.msra.mxu0 %v66
    %288 = vmatprep.subr.mxu0 0.0
    %289 = vmatpush1.msra.mxu0 %v67
    %290 = vmatprep.subr.mxu0 0.0
    %291 = vmatpush1.msra.mxu0 %v68
    %292 = vmatprep.subr.mxu0 0.0
    %293 = vmatpush1.msra.mxu0 %v69
    %294 = vmatprep.subr.mxu0 0.0
    %295 = vmatpush1.msra.mxu0 %v70
    %296 = vmatprep.subr.mxu0 0.0
    %297 = vmatpush1.msra.mxu0 %v71
    %298 = vmatprep.subr.mxu0 0.0
    %299 = vmatpush1.msra.mxu0 %v72
    %300 = vmatprep.subr.mxu0 0.0
    %301 = vmatpush1.msra.mxu0 %v73
    %302 = vmatprep.subr.mxu0 0.0
    %303 = vmatpush1.msra.mxu0 %v74
    %304 = vmatprep.subr.mxu0 0.0
    %305 = vmatpush1.msra.mxu0 %v75
    %306 = vmatprep.subr.mxu0 0.0
    %307 = vmatpush1.msra.mxu0 %v76
    %308 = vmatprep.subr.mxu0 0.0
    %309 = vmatpush1.msra.mxu0 %v77
    %310 = vmatprep.subr.mxu0 0.0
    %311 = vmatpush1.msra.mxu0 %v78
    %312 = vmatprep.subr.mxu0 0.0
    %313 = vmatpush1.msra.mxu0 %v79
    %314 = vmatprep.subr.mxu0 0.0
    %315 = vmatpush1.msra.mxu0 %v80
    %316 = vmatprep.subr.mxu0 0.0
    %317 = vmatpush1.msra.mxu0 %v81
    %318 = vmatprep.subr.mxu0 0.0
    %319 = vmatpush1.msra.mxu0 %v82
    %320 = vmatprep.subr.mxu0 0.0
    %321 = vmatpush1.msra.mxu0 %v83
    %322 = vmatprep.subr.mxu0 0.0
    %323 = vmatpush1.msra.mxu0 %v84
    %324 = vmatprep.subr.mxu0 0.0
    %325 = vmatpush1.msra.mxu0 %v85
    %326 = vmatprep.subr.mxu0 0.0
    %327 = vmatpush1.msra.mxu0 %v86
    %328 = vmatprep.subr.mxu0 0.0
    %329 = vmatpush1.msra.mxu0 %v87
    %330 = vmatprep.mubr.f32.mxu0 %v170
    %331 = vmatmul.mubr.f32.gmra.mrb[0].mxu0 %v168
    %v332 = vpop.f32.mrb[0].mxu0
    %v333 = vadd.f32 %v263, %v332
    %v334 = vpop.f32.mrb[0].mxu0
    %335 = vdwg.mxu0
    %336 = vmatprep.subr.mxu0 0.0
    %337 = vmatpush1.msra.mxu0 %v88
    %338 = vmatprep.subr.mxu0 0.0
    %339 = vmatpush1.msra.mxu0 %v89
    %340 = vmatprep.subr.mxu0 0.0
    %341 = vmatpush1.msra.mxu0 %v90
    %342 = vmatprep.subr.mxu0 0.0
    %343 = vmatpush1.msra.mxu0 %v91
    %344 = vmatprep.subr.mxu0 0.0
    %345 = vmatpush1.msra.mxu0 %v92
    %346 = vmatprep.subr.mxu0 0.0
    %347 = vmatpush1.msra.mxu0 %v93
    %348 = vmatprep.subr.mxu0 0.0
    %349 = vmatpush1.msra.mxu0 %v94
    %350 = vmatprep.subr.mxu0 0.0
    %351 = vmatpush1.msra.mxu0 %v95
    %352 = vmatprep.subr.mxu0 0.0
    %353 = vmatpush1.msra.mxu0 %v96
    %354 = vmatprep.subr.mxu0 0.0
    %355 = vmatpush1.msra.mxu0 %v97
    %356 = vmatprep.subr.mxu0 0.0
    %357 = vmatpush1.msra.mxu0 %v98
    %358 = vmatprep.subr.mxu0 0.0
    %359 = vmatpush1.msra.mxu0 %v99
    %360 = vmatprep.subr.mxu0 0.0
    %361 = vmatpush1.msra.mxu0 %v100
    %362 = vmatprep.subr.mxu0 0.0
    %363 = vmatpush1.msra.mxu0 %v101
    %364 = vmatprep.subr.mxu0 0.0
    %365 = vmatpush1.msra.mxu0 %v102
    %366 = vmatprep.subr.mxu0 0.0
    %367 = vmatpush1.msra.mxu0 %v103
    %368 = vmatprep.subr.mxu0 0.0
    %369 = vmatpush1.msra.mxu0 %v104
    %370 = vmatprep.subr.mxu0 0.0
    %371 = vmatpush1.msra.mxu0 %v105
    %372 = vmatprep.subr.mxu0 0.0
    %373 = vmatpush1.msra.mxu0 %v106
    %374 = vmatprep.subr.mxu0 0.0
    %375 = vmatpush1.msra.mxu0 %v107
    %376 = vmatprep.subr.mxu0 0.0
    %377 = vmatpush1.msra.mxu0 %v108
    %378 = vmatprep.subr.mxu0 0.0
    %379 = vmatpush1.msra.mxu0 %v109
    %380 = vmatprep.subr.mxu0 0.0
    %381 = vmatpush1.msra.mxu0 %v110
    %382 = vmatprep.subr.mxu0 0.0
    %383 = vmatpush1.msra.mxu0 %v111
    %384 = vmatprep.subr.mxu0 0.0
    %385 = vmatpush1.msra.mxu0 %v112
    %386 = vmatprep.subr.mxu0 0.0
    %387 = vmatpush1.msra.mxu0 %v113
    %388 = vmatprep.subr.mxu0 0.0
    %389 = vmatpush1.msra.mxu0 %v114
    %390 = vmatprep.subr.mxu0 0.0
    %391 = vmatpush1.msra.mxu0 %v115
    %392 = vmatprep.subr.mxu0 0.0
    %393 = vmatpush1.msra.mxu0 %v116
    %394 = vmatprep.subr.mxu0 0.0
    %395 = vmatpush1.msra.mxu0 %v117
    %396 = vmatprep.subr.mxu0 0.0
    %397 = vmatpush1.msra.mxu0 %v118
    %398 = vmatprep.subr.mxu0 0.0
    %399 = vmatpush1.msra.mxu0 %v119
    %400 = vmatprep.mubr.f32.mxu0 %v186
    %401 = vmatmul.mubr.f32.gmra.mrb[0].mxu0 %v178
    %v402 = vpop.f32.mrb[0].mxu0
    %v403 = vadd.f32 %v333, %v402
    %v404 = vpop.f32.mrb[0].mxu0
    %405 = vdwg.mxu0
    %406 = vmatprep.subr.mxu0 0.0
    %407 = vmatpush1.msra.mxu0 %v120
    %408 = vmatprep.subr.mxu0 0.0
    %409 = vmatpush1.msra.mxu0 %v121
    %410 = vmatprep.subr.mxu0 0.0
    %411 = vmatpush1.msra.mxu0 %v122
    %412 = vmatprep.subr.mxu0 0.0
    %413 = vmatpush1.msra.mxu0 %v123
    %414 = vmatprep.subr.mxu0 0.0
    %415 = vmatpush1.msra.mxu0 %v124
    %416 = vmatprep.subr.mxu0 0.0
    %417 = vmatpush1.msra.mxu0 %v125
    %418 = vmatprep.subr.mxu0 0.0
    %419 = vmatpush1.msra.mxu0 %v126
    %420 = vmatprep.subr.mxu0 0.0
    %421 = vmatpush1.msra.mxu0 %v127
    %422 = vmatprep.subr.mxu0 0.0
    %423 = vmatpush1.msra.mxu0 %v128
    %424 = vmatprep.subr.mxu0 0.0
    %425 = vmatpush1.msra.mxu0 %v129
    %426 = vmatprep.subr.mxu0 0.0
    %427 = vmatpush1.msra.mxu0 %v130
    %428 = vmatprep.subr.mxu0 0.0
    %429 = vmatpush1.msra.mxu0 %v131
    %430 = vmatprep.subr.mxu0 0.0
    %431 = vmatpush1.msra.mxu0 %v132
    %432 = vmatprep.subr.mxu0 0.0
    %433 = vmatpush1.msra.mxu0 %v133
    %434 = vmatprep.subr.mxu0 0.0
    %435 = vmatpush1.msra.mxu0 %v134
    %436 = vmatprep.subr.mxu0 0.0
    %437 = vmatpush1.msra.mxu0 %v135
    %438 = vmatprep.subr.mxu0 0.0
    %439 = vmatpush1.msra.mxu0 %v136
    %440 = vmatprep.subr.mxu0 0.0
    %441 = vmatpush1.msra.mxu0 %v137
    %442 = vmatprep.subr.mxu0 0.0
    %443 = vmatpush1.msra.mxu0 %v138
    %444 = vmatprep.subr.mxu0 0.0
    %445 = vmatpush1.msra.mxu0 %v139
    %446 = vmatprep.subr.mxu0 0.0
    %447 = vmatpush1.msra.mxu0 %v140
    %448 = vmatprep.subr.mxu0 0.0
    %449 = vmatpush1.msra.mxu0 %v141
    %450 = vmatprep.subr.mxu0 0.0
    %451 = vmatpush1.msra.mxu0 %v142
    %452 = vmatprep.subr.mxu0 0.0
    %453 = vmatpush1.msra.mxu0 %v143
    %454 = vmatprep.subr.mxu0 0.0
    %455 = vmatpush1.msra.mxu0 %v144
    %456 = vmatprep.subr.mxu0 0.0
    %457 = vmatpush1.msra.mxu0 %v145
    %458 = vmatprep.subr.mxu0 0.0
    %459 = vmatpush1.msra.mxu0 %v146
    %460 = vmatprep.subr.mxu0 0.0
    %461 = vmatpush1.msra.mxu0 %v147
    %462 = vmatprep.subr.mxu0 0.0
    %463 = vmatpush1.msra.mxu0 %v148
    %464 = vmatprep.subr.mxu0 0.0
    %465 = vmatpush1.msra.mxu0 %v149
    %466 = vmatprep.subr.mxu0 0.0
    %467 = vmatpush1.msra.mxu0 %v150
    %468 = vmatprep.subr.mxu0 0.0
    %469 = vmatpush1.msra.mxu0 %v151
    %470 = vmatprep.mubr.f32.mxu0 %v187
    %471 = vmatmul.mubr.f32.gmra.mrb[0].mxu0 %v185
    %v472 = vpop.f32.mrb[0].mxu0
    %v473 = vadd.f32 %v403, %v472
    %v474 = vpop.f32.mrb[0].mxu0
    %475 = vdwg.mxu0
    %v476 = vadd.f32 %v21, %v473
    %vm477 = vcmask 254976
    %478 = vst.msk [vmem:[#allocation2] sm:$0x3] %vm477, %v476
    // Predicated region
    $region18: #{tpu_custom_call.1} parent=1 // pred_check
      %p479 = pneg %p15
    $region19: #{tpu_custom_call.1} parent=1 // pred_check_branch
      %481 = sbr.rel (%p479) target = $region21
    $region20: #{tpu_custom_call.1} parent=1 // pred_region
      %v482 = vld [vmem:[#allocation2] sm:$0x3]
      %v483 = vld [vmem:[%s2] sm:$0x1]
      %v485 = vlaneseq
      %v486 = vshrl.u32 %v485, 7
      %v487 = vsub.s32 0, %v486
      %v488 = vrot.slane %v483, %v487
      %v490 = vadd.f32 %v482, %v488
      %491 = vst.msk [vmem:[#allocation3] sm:$0x3] %vm477, %v490
    $region21: #{tpu_custom_call.1} parent=1 // pred_fallthru
      _
    // Predicated region
    $region22: #{tpu_custom_call.1} parent=1 // pred_check
      _
    $region23: #{tpu_custom_call.1} parent=1 // pred_check_branch
      %493 = sbr.rel (0) target = $region25
    $region24: #{tpu_custom_call.1} parent=1 // pred_region
      %s495 = ssub.s32 32, 32
      %496 = vsyncadd [#allocation4], %s495
      %s498 = sshll.u32 [#allocation3], 4
      %s499 = int_to_ptr.vmem [resolvable:$true] %s498
      %501 = dma.vmem_to_hbm [thread:$0]  %s499, 32, %s3, [#allocation4]
    $region25: #{tpu_custom_call.1} parent=1 // pred_fallthru
      _
    // Predicated region
    $region26: #{tpu_custom_call.1} parent=1 // pred_check
      _
    $region27: #{tpu_custom_call.1} parent=1 // pred_check_branch
      %503 = sbr.rel (0) target = $region29
    $region28: #{tpu_custom_call.1} parent=1 // pred_region
      %504 = dma.done [#allocation4], 32
    $region29: #{tpu_custom_call.1} parent=1 // pred_fallthru
      _
    %505 = vsyncpa [#allocation4], 1

</llo_original>
